<compile_context>
chip_gen: v7x
topology: tpu7x:2x2x1
jax: 0.10.0
libtpu: 0.0.40
codegen_flags: <defaults>
</compile_context>

<pallas_src>
import jax
import jax.numpy as jnp
from jax import lax
from jax.experimental import pallas as pl
from jax.experimental.pallas import tpu as pltpu


_LANE = 128        # TPU lane width: channel-like dims padded to multiples of this
_SUBLANE = 8       # sublane width: P tiles are multiples of this
_EPS = 1e-5        # nn.InstanceNorm2d default eps


def _round_up(x, m):
    return ((x + m - 1) // m) * m


def _apply_activation(y, activation):
    if activation == 'relu':
        return jnp.maximum(y, 0.0)
    if activation == 'tanh':
        return jnp.tanh(y)
    if activation == 'sigmoid':
        return jax.nn.sigmoid(y)
    return y


# --------------------------------------------------------------------------
# Kernels
# --------------------------------------------------------------------------
def _make_stats_kernel(tp, p_true, p_pad):
    """Pass 1: y = patches @ W + b (f32 accum); accumulate s1 = sum(y), s2 = sum(y^2)."""
    need_mask = (p_pad != p_true)

    def kernel(p_ref, w_ref, b_ref, y_ref, s1_ref, s2_ref):
        pt = pl.program_id(1)

        @pl.when(pt == 0)
        def _():
            s1_ref[...] = jnp.zeros_like(s1_ref)
            s2_ref[...] = jnp.zeros_like(s2_ref)

        y = jnp.dot(p_ref[0], w_ref[...], preferred_element_type=jnp.float32)
        y = y + b_ref[...]                                  # (TP, OCp) + (1, OCp)
        y_ref[0] = y.astype(y_ref.dtype)

        if need_mask:
            # Rows beyond the true spatial extent P are zero-padding of the
            # patches (their y equals the bias) -> exclude from the statistics.
            row = lax.broadcasted_iota(jnp.int32, (tp, 1), 0) + pt * tp
            valid = (row < p_true).astype(jnp.float32)      # (TP, 1)
            ym = y * valid
        else:
            ym = y
        s1_ref[0] += jnp.sum(ym, axis=0, keepdims=True)     # (1, OCp)
        s2_ref[0] += jnp.sum(ym * y, axis=0, keepdims=True)

    return kernel


def _make_norm_act_kernel(activation):
    """Pass 2: out = y * scale + shift (one FMA / element) + fused activation."""
    def kernel(y_ref, scale_ref, shift_ref, o_ref):
        y = y_ref[0].astype(jnp.float32)                    # (TP, OCp)
        out = y * scale_ref[0] + shift_ref[0]
        o_ref[0] = _apply_activation(out, activation).astype(o_ref.dtype)
    return kernel


def _make_conv_act_kernel(activation):
    """norm='None' path: matmul + bias + fused activation, single pass."""
    def kernel(p_ref, w_ref, b_ref, o_ref):
        y = jnp.dot(p_ref[0], w_ref[...], preferred_element_type=jnp.float32)
        y = y + b_ref[...]
        o_ref[0] = _apply_activation(y, activation).astype(o_ref.dtype)
    return kernel


# --------------------------------------------------------------------------
# Core: NHWC conv (+ InstanceNorm + activation) on a pre-padded input
# --------------------------------------------------------------------------
def conv_core_nhwc(xp, weight, bias, *, stride, norm='instance', gamma=None,
                   beta=None, activation='none', compute_dtype=jnp.bfloat16,
                   tile_p=512):
    """VALID conv + optional InstanceNorm2d(affine) + optional activation.

    xp:     (N, Hp, Wp, C)  pre-padded NHWC input (float32).
    weight: (OC, C, K, K)   PyTorch Conv2d layout.
    bias / gamma / beta: (OC,)
    Returns (N, Ho, Wo, OC) float32, NHWC.
    """
    N, Hp, Wp, C = xp.shape
    OC, _, K, _ = weight.shape
    Ho = (Hp - K) // stride + 1
    Wo = (Wp - K) // stride + 1
    P = Ho * Wo
    CKK = C * K * K

    # ---- glue: im2col in NHWC (spatial-major rows, (ky, kx, c) columns) ----
    # TODO(synk): in-kernel halo-BlockSpec patch formation would avoid this
    # K^2-amplified HBM round trip.
    cols = []
    for ky in range(K):
        for kx in range(K):
            cols.append(xp[:, ky:ky + stride * Ho:stride,
                              kx:kx + stride * Wo:stride, :])
    patches = jnp.stack(cols, axis=3)                       # (N, Ho, Wo, K*K, C)
    patches = patches.reshape(N, P, CKK).astype(compute_dtype)

    # (OC, C, K, K) -> (K, K, C, OC) -> (CKK, OC): rows match the patch columns.
    w_mat = weight.transpose(2, 3, 1, 0).reshape(CKK, OC).astype(compute_dtype)
    b_row = bias.reshape(1, OC).astype(jnp.float32)

    # ---- pad to lane/sublane-friendly shapes -------------------------------
    OCp = _round_up(OC, _LANE)          # lane-dense output stores
    CKKp = _round_up(CKK, _LANE)        # full-width MXU contraction

    # VMEM budget: double-buffered (patches tile + f32 y tile) per step must
    # stay well under the 32 MiB default scoped limit (and v7x's 64 MiB VMEM).
    itemsize = jnp.dtype(compute_dtype).itemsize
    row_bytes = CKKp * itemsize + OCp * 4
    budget = 8 * 1024 * 1024
    tp_cap = max(_SUBLANE, (budget // (2 * row_bytes)) // _SUBLANE * _SUBLANE)
    TP = min(tile_p, tp_cap, _round_up(P, _SUBLANE))
    Pp = _round_up(P, TP)

    patches = jnp.pad(patches, ((0, 0), (0, Pp - P), (0, CKKp - CKK)))
    w_mat = jnp.pad(w_mat, ((0, CKKp - CKK), (0, OCp - OC)))
    b_row = jnp.pad(b_row, ((0, 0), (0, OCp - OC)))

    grid = (N, Pp // TP)

    if norm == 'instance':
        # ---- pass 1: matmul + per-instance sum / sum-of-squares ------------
        y, s1, s2 = pl.pallas_call(
            _make_stats_kernel(TP, P, Pp),
            out_shape=(
                jax.ShapeDtypeStruct((N, Pp, OCp), jnp.float32),
                jax.ShapeDtypeStruct((N, 1, OCp), jnp.float32),
                jax.ShapeDtypeStruct((N, 1, OCp), jnp.float32),
            ),
            grid_spec=pltpu.PrefetchScalarGridSpec(
                num_scalar_prefetch=0,
                grid=grid,
                in_specs=[
                    pl.BlockSpec((1, TP, CKKp), lambda n, p: (n, p, 0)),
                    pl.BlockSpec((CKKp, OCp), lambda n, p: (0, 0)),
                    pl.BlockSpec((1, OCp), lambda n, p: (0, 0)),
                ],
                out_specs=(
                    pl.BlockSpec((1, TP, OCp), lambda n, p: (n, p, 0)),
                    pl.BlockSpec((1, 1, OCp), lambda n, p: (n, 0, 0)),
                    pl.BlockSpec((1, 1, OCp), lambda n, p: (n, 0, 0)),
                ),
            ),
            compiler_params=pltpu.CompilerParams(
                dimension_semantics=("parallel", "arbitrary")),
        )(patches, w_mat, b_row)

        # ---- glue: tiny (N, OCp) per-instance scale / shift ----------------
        g_row = jnp.pad(gamma.astype(jnp.float32).reshape(1, OC),
                        ((0, 0), (0, OCp - OC)), constant_values=1.0)
        be_row = jnp.pad(beta.astype(jnp.float32).reshape(1, OC),
                         ((0, 0), (0, OCp - OC)))
        mean = s1[:, 0, :] / P                                       # (N, OCp)
        var = jnp.maximum(s2[:, 0, :] / P - mean * mean, 0.0)        # biased var
        scale = g_row * lax.rsqrt(var + _EPS)
        shift = be_row - mean * scale
        scale = scale[:, None, :]                                    # (N, 1, OCp)
        shift = shift[:, None, :]

        # ---- pass 2: normalize (one FMA / element) + fused activation ------
        out = pl.pallas_call(
            _make_norm_act_kernel(activation),
            out_shape=jax.ShapeDtypeStruct((N, Pp, OCp), jnp.float32),
            grid_spec=pltpu.PrefetchScalarGridSpec(
                num_scalar_prefetch=0,
                grid=grid,
                in_specs=[
                    pl.BlockSpec((1, TP, OCp), lambda n, p: (n, p, 0)),
                    pl.BlockSpec((1, 1, OCp), lambda n, p: (n, 0, 0)),
                    pl.BlockSpec((1, 1, OCp), lambda n, p: (n, 0, 0)),
                ],
                out_specs=pl.BlockSpec((1, TP, OCp), lambda n, p: (n, p, 0)),
            ),
            compiler_params=pltpu.CompilerParams(
                dimension_semantics=("parallel", "parallel")),
        )(y, scale, shift)

    elif norm == 'None' or norm is None:
        out = pl.pallas_call(
            _make_conv_act_kernel(activation),
            out_shape=jax.ShapeDtypeStruct((N, Pp, OCp), jnp.float32),
            grid_spec=pltpu.PrefetchScalarGridSpec(
                num_scalar_prefetch=0,
                grid=grid,
                in_specs=[
                    pl.BlockSpec((1, TP, CKKp), lambda n, p: (n, p, 0)),
                    pl.BlockSpec((CKKp, OCp), lambda n, p: (0, 0)),
                    pl.BlockSpec((1, OCp), lambda n, p: (0, 0)),
                ],
                out_specs=pl.BlockSpec((1, TP, OCp), lambda n, p: (n, p, 0)),
            ),
            compiler_params=pltpu.CompilerParams(
                dimension_semantics=("parallel", "parallel")),
        )(patches, w_mat, b_row)
    else:
        # TODO(synk): norm='batch' (BatchNorm2d) not implemented — the target
        # network only uses 'instance' and 'None'.
        raise NotImplementedError("norm='batch' not implemented")

    # Slice off lane/sublane padding (cheap XLA glue) and restore spatial dims.
    return out[:, :P, :OC].reshape(N, Ho, Wo, OC)


def conv_layer_nhwc(x, weight, bias, gamma=None, beta=None, *, kernel_size,
                    stride, norm='instance', activation='none',
                    compute_dtype=jnp.bfloat16, tile_p=512):
    """ConvLayer on NHWC activations (reflect pad -> conv -> [IN] -> [act])."""
    pad = kernel_size // 2
    if pad > 0:
        x = jnp.pad(x, ((0, 0), (pad, pad), (pad, pad), (0, 0)), mode='reflect')
    return conv_core_nhwc(x, weight, bias, stride=stride, norm=norm,
                          gamma=gamma, beta=beta, activation=activation,
                          compute_dtype=compute_dtype, tile_p=tile_p)


def conv_layer_forward(x, weight, bias, gamma=None, beta=None, *, kernel_size,
                       stride, norm='instance', activation='none',
                       compute_dtype=jnp.bfloat16, tile_p=512):
    """Module-equivalent API: NCHW in, NCHW out.

    The layout conversion happens only here (network boundary); when stacking
    layers, use `conv_layer_nhwc` directly and keep activations NHWC.
    """
    x_nhwc = jnp.transpose(x, (0, 2, 3, 1))
    out = conv_layer_nhwc(x_nhwc, weight, bias, gamma, beta,
                          kernel_size=kernel_size, stride=stride, norm=norm,
                          activation=activation, compute_dtype=compute_dtype,
                          tile_p=tile_p)
    return jnp.transpose(out, (0, 3, 1, 2))


# --------------------------------------------------------------------------
# Pure-JAX reference (PyTorch semantics), NCHW
# --------------------------------------------------------------------------
def _reference(x, weight, bias, gamma=None, beta=None, *, kernel_size, stride,
               norm='instance', activation='none', cast_dtype=None):
    if cast_dtype is not None:
        # Emulate bf16 matmul operands with f32 accumulation.
        x = x.astype(cast_dtype).astype(jnp.float32)
        weight = weight.astype(cast_dtype).astype(jnp.float32)
    pad = kernel_size // 2
    xp = jnp.pad(x, ((0, 0), (0, 0), (pad, pad), (pad, pad)),
                 mode='reflect') if pad > 0 else x
    y = lax.conv_general_dilated(
        xp, weight, (stride, stride), 'VALID',
        dimension_numbers=('NCHW', 'OIHW', 'NCHW'),
        preferred_element_type=jnp.float32)
    y = y + bias[None, :, None, None]
    if norm == 'instance':
        m = y.mean(axis=(2, 3), keepdims=True)
        v = ((y - m) ** 2).mean(axis=(2, 3), keepdims=True)
        y = (y - m) * lax.rsqrt(v + _EPS)
        y = y * gamma[None, :, None, None] + beta[None, :, None, None]
    return _apply_activation(y, activation)


# --------------------------------------------------------------------------
# Demo / correctness checks (small shapes)
# --------------------------------------------------------------------------
if __name__ == "__main__":
    key = jax.random.PRNGKey(0)

    def make_params(k, oc, ic, ks):
        kw, kb, kg, kbe = jax.random.split(k, 4)
        w = jax.random.normal(kw, (oc, ic, ks, ks), jnp.float32)
        w = w * (1.0 / (ic * ks * ks) ** 0.5)
        b = 0.1 * jax.random.normal(kb, (oc,), jnp.float32)
        g = 1.0 + 0.1 * jax.random.normal(kg, (oc,), jnp.float32)
        be = 0.1 * jax.random.normal(kbe, (oc,), jnp.float32)
        return w, b, g, be

    k0, k1, k2, k3, k4, k5 = jax.random.split(key, 6)

    # --- Test 1: instance norm, K=3, stride=1, f32; P=324 -> three 128-row
    #             tiles including a partially-masked last tile.
    x1 = jax.random.normal(k0, (2, 4, 18, 18), jnp.float32)
    w1, b1, g1, be1 = make_params(k1, 8, 4, 3)
    out1 = conv_layer_forward(x1, w1, b1, g1, be1, kernel_size=3, stride=1,
                              norm='instance', compute_dtype=jnp.float32,
                              tile_p=128)
    out1 = jax.block_until_ready(out1)
    ref1 = _reference(x1, w1, b1, g1, be1, kernel_size=3, stride=1,
                      norm='instance')
    assert out1.shape == ref1.shape, (out1.shape, ref1.shape)
    assert jnp.allclose(out1, ref1, atol=1e-4, rtol=1e-4), \
        float(jnp.max(jnp.abs(out1 - ref1)))

    # --- Test 2: instance norm, K=3, stride=2, bf16 matmul operands
    #             (f32 accumulation / stats).
    x2 = jax.random.normal(k2, (2, 4, 16, 16), jnp.float32)
    w2, b2, g2, be2 = make_params(k3, 8, 4, 3)
    out2 = conv_layer_forward(x2, w2, b2, g2, be2, kernel_size=3, stride=2,
                              norm='instance', compute_dtype=jnp.bfloat16)
    out2 = jax.block_until_ready(out2)
    ref2 = _reference(x2, w2, b2, g2, be2, kernel_size=3, stride=2,
                      norm='instance', cast_dtype=jnp.bfloat16)
    assert out2.shape == ref2.shape, (out2.shape, ref2.shape)
    assert jnp.allclose(out2, ref2, atol=2e-3, rtol=2e-3), \
        float(jnp.max(jnp.abs(out2 - ref2)))

    # --- Test 3: norm='None' + fused tanh (the network's final ConvLayer),
    #             K=9, stride=1, f32.
    x3 = jax.random.normal(k4, (2, 4, 16, 16), jnp.float32)
    w3, b3, _, _ = make_params(k5, 8, 4, 9)
    out3 = conv_layer_forward(x3, w3, b3, kernel_size=9, stride=1, norm='None',
                              activation='tanh', compute_dtype=jnp.float32)
    out3 = jax.block_until_ready(out3)
    ref3 = _reference(x3, w3, b3, kernel_size=9, stride=1, norm='None',
                      activation='tanh')
    assert out3.shape == ref3.shape, (out3.shape, ref3.shape)
    assert jnp.allclose(out3, ref3, atol=1e-4, rtol=1e-4), \
        float(jnp.max(jnp.abs(out3 - ref3)))

    print("KERNEL_OK")
</pallas_src>

<mosaic_0001>
module attributes {stable_mosaic.version = 11 : i64} {
  func.func @kernel(%arg0: i32, %arg1: i32, %arg2: memref<1x128x128xf32, #tpu.memory_space<vmem>>, %arg3: memref<128x128xf32, #tpu.memory_space<vmem>>, %arg4: memref<1x128xf32, #tpu.memory_space<vmem>>, %arg5: memref<1x128x128xf32, #tpu.memory_space<vmem>>, %arg6: memref<1x1x128xf32, #tpu.memory_space<vmem>>, %arg7: memref<1x1x128xf32, #tpu.memory_space<vmem>>) attributes {dimension_semantics = [#tpu.dimension_semantics<parallel>, #tpu.dimension_semantics<arbitrary>], iteration_bounds = array<i64: 2, 3>, scalar_prefetch = 0 : i64, scratch_operands = 0 : i64, tpu.core_type = #tpu.core_type<tc>, window_params = [{transform_indices = @transform_0, window_bounds = array<i64: 1, 128, 128>}, {pipeline_mode = #tpu.pipeline_mode<synchronous>, transform_indices = @transform_1, window_bounds = array<i64: 128, 128>}, {pipeline_mode = #tpu.pipeline_mode<synchronous>, transform_indices = @transform_2, window_bounds = array<i64: 1, 128>}, {transform_indices = @transform_3, window_bounds = array<i64: 1, 128, 128>}, {transform_indices = @transform_4, window_bounds = array<i64: 1, 1, 128>}, {transform_indices = @transform_5, window_bounds = array<i64: 1, 1, 128>}]} {
    %c0_i32 = arith.constant 0 : i32
    %0 = arith.cmpi eq, %arg1, %c0_i32 : i32
    %1 = arith.extui %0 : i1 to i32
    %c0_i32_0 = arith.constant 0 : i32
    %2 = arith.cmpi ne, %1, %c0_i32_0 : i32
    scf.if %2 {
      %cst_24 = arith.constant 0.000000e+00 : f32
      %40 = vector.broadcast %cst_24 : f32 to vector<1x1x128xf32>
      %c0_25 = arith.constant 0 : index
      %c0_26 = arith.constant 0 : index
      %c0_27 = arith.constant 0 : index
      %41 = vector.load %arg6[%c0_25, %c0_26, %c0_27] : memref<1x1x128xf32, #tpu.memory_space<vmem>>, vector<1x1x128xf32>
      tpu.vector_store %arg6[%c0_25, %c0_26, %c0_27], %40 {strides = array<i32>} : memref<1x1x128xf32, #tpu.memory_space<vmem>>, vector<1x1x128xf32>,
      %cst_28 = arith.constant 0.000000e+00 : f32
      %42 = vector.broadcast %cst_28 : f32 to vector<1x1x128xf32>
      %c0_29 = arith.constant 0 : index
      %c0_30 = arith.constant 0 : index
      %c0_31 = arith.constant 0 : index
      %43 = vector.load %arg7[%c0_29, %c0_30, %c0_31] : memref<1x1x128xf32, #tpu.memory_space<vmem>>, vector<1x1x128xf32>
      tpu.vector_store %arg7[%c0_29, %c0_30, %c0_31], %42 {strides = array<i32>} : memref<1x1x128xf32, #tpu.memory_space<vmem>>, vector<1x1x128xf32>,
    } else {
    }
    %c0 = arith.constant 0 : index
    %c0_1 = arith.constant 0 : index
    %c0_2 = arith.constant 0 : index
    %3 = vector.load %arg2[%c0, %c0_1, %c0_2] : memref<1x128x128xf32, #tpu.memory_space<vmem>>, vector<1x128x128xf32>
    %4 = vector.shape_cast %3 : vector<1x128x128xf32> to vector<128x128xf32>
    %c0_3 = arith.constant 0 : index
    %c0_4 = arith.constant 0 : index
    %5 = vector.load %arg3[%c0_3, %c0_4] : memref<128x128xf32, #tpu.memory_space<vmem>>, vector<128x128xf32>
    %cst = arith.constant dense<0.000000e+00> : vector<128x128xf32>
    %6 = tpu.matmul %4, %5, %cst {dimension_numbers = #tpu.dot_dimension_numbers<[1], [0], [0], [1], [0, 0, 1, 1], [], []>} : vector<128x128xf32>, vector<128x128xf32>, vector<128x128xf32> -> vector<128x128xf32>
    %c0_5 = arith.constant 0 : index
    %c0_6 = arith.constant 0 : index
    %7 = vector.load %arg4[%c0_5, %c0_6] : memref<1x128xf32, #tpu.memory_space<vmem>>, vector<1x128xf32>
    %8 = vector.broadcast %7 : vector<1x128xf32> to vector<128x128xf32>
    %9 = arith.addf %6, %8 : vector<128x128xf32>
    %c0_7 = arith.constant 0 : index
    %c0_8 = arith.constant 0 : index
    %c0_9 = arith.constant 0 : index
    %10 = vector.load %arg5[%c0_7, %c0_8, %c0_9] : memref<1x128x128xf32, #tpu.memory_space<vmem>>, vector<1x128x128xf32>
    %11 = vector.shape_cast %10 : vector<1x128x128xf32> to vector<128x128xf32>
    %12 = vector.shape_cast %9 : vector<128x128xf32> to vector<1x128x128xf32>
    tpu.vector_store %arg5[%c0_7, %c0_8, %c0_9], %12 {strides = array<i32>} : memref<1x128x128xf32, #tpu.memory_space<vmem>>, vector<1x128x128xf32>,
    %13 = tpu.iota {dimensions = array<i32: 0>} : vector<128x1xi32>
    %c128_i32 = arith.constant 128 : i32
    %14 = arith.muli %arg1, %c128_i32 : i32
    %15 = vector.broadcast %14 : i32 to vector<128x1xi32>
    %16 = arith.addi %13, %15 : vector<128x1xi32>
    %c324_i32 = arith.constant 324 : i32
    %17 = vector.broadcast %c324_i32 : i32 to vector<128x1xi32>
    %18 = arith.cmpi slt, %16, %17 : vector<128x1xi32>
    %19 = arith.extui %18 : vector<128x1xi1> to vector<128x1xi32>
    %20 = arith.sitofp %19 : vector<128x1xi32> to vector<128x1xf32>
    %21 = vector.broadcast %20 : vector<128x1xf32> to vector<128x128xf32>
    %22 = arith.mulf %9, %21 : vector<128x128xf32>
    %c0_10 = arith.constant 0 : index
    %c0_11 = arith.constant 0 : index
    %c0_12 = arith.constant 0 : index
    %23 = vector.load %arg6[%c0_10, %c0_11, %c0_12] : memref<1x1x128xf32, #tpu.memory_space<vmem>>, vector<1x1x128xf32>
    %24 = vector.shape_cast %23 : vector<1x1x128xf32> to vector<1x128xf32>
    %cst_13 = arith.constant dense<0.000000e+00> : vector<128xf32>
    %25 = vector.multi_reduction <add>, %22, %cst_13 [0] : vector<128x128xf32> to vector<128xf32>
    %26 = vector.shape_cast %25 : vector<128xf32> to vector<1x128xf32>
    %27 = arith.addf %24, %26 : vector<1x128xf32>
    %c0_14 = arith.constant 0 : index
    %c0_15 = arith.constant 0 : index
    %c0_16 = arith.constant 0 : index
    %28 = vector.load %arg6[%c0_14, %c0_15, %c0_16] : memref<1x1x128xf32, #tpu.memory_space<vmem>>, vector<1x1x128xf32>
    %29 = vector.shape_cast %28 : vector<1x1x128xf32> to vector<1x128xf32>
    %30 = vector.shape_cast %27 : vector<1x128xf32> to vector<1x1x128xf32>
    tpu.vector_store %arg6[%c0_14, %c0_15, %c0_16], %30 {strides = array<i32>} : memref<1x1x128xf32, #tpu.memory_space<vmem>>, vector<1x1x128xf32>,
    %c0_17 = arith.constant 0 : index
    %c0_18 = arith.constant 0 : index
    %c0_19 = arith.constant 0 : index
    %31 = vector.load %arg7[%c0_17, %c0_18, %c0_19] : memref<1x1x128xf32, #tpu.memory_space<vmem>>, vector<1x1x128xf32>
    %32 = vector.shape_cast %31 : vector<1x1x128xf32> to vector<1x128xf32>
    %33 = arith.mulf %22, %9 : vector<128x128xf32>
    %cst_20 = arith.constant dense<0.000000e+00> : vector<128xf32>
    %34 = vector.multi_reduction <add>, %33, %cst_20 [0] : vector<128x128xf32> to vector<128xf32>
    %35 = vector.shape_cast %34 : vector<128xf32> to vector<1x128xf32>
    %36 = arith.addf %32, %35 : vector<1x128xf32>
    %c0_21 = arith.constant 0 : index
    %c0_22 = arith.constant 0 : index
    %c0_23 = arith.constant 0 : index
    %37 = vector.load %arg7[%c0_21, %c0_22, %c0_23] : memref<1x1x128xf32, #tpu.memory_space<vmem>>, vector<1x1x128xf32>
    %38 = vector.shape_cast %37 : vector<1x1x128xf32> to vector<1x128xf32>
    %39 = vector.shape_cast %36 : vector<1x128xf32> to vector<1x1x128xf32>
    tpu.vector_store %arg7[%c0_21, %c0_22, %c0_23], %39 {strides = array<i32>} : memref<1x1x128xf32, #tpu.memory_space<vmem>>, vector<1x1x128xf32>,
    return
  }
  func.func @transform_0(%arg0: i32, %arg1: i32) -> (i32, i32, i32) {
    %c0_i32 = arith.constant 0 : i32
    %c0_i32_0 = arith.constant 0 : i32
    return %arg0, %arg1, %c0_i32 : i32, i32, i32
  }
  func.func @transform_1(%arg0: i32, %arg1: i32) -> (i32, i32) {
    %c0_i32 = arith.constant 0 : i32
    %c0_i32_0 = arith.constant 0 : i32
    %c0_i32_1 = arith.constant 0 : i32
    return %c0_i32, %c0_i32_0 : i32, i32
  }
  func.func @transform_2(%arg0: i32, %arg1: i32) -> (i32, i32) {
    %c0_i32 = arith.constant 0 : i32
    %c0_i32_0 = arith.constant 0 : i32
    %c0_i32_1 = arith.constant 0 : i32
    return %c0_i32, %c0_i32_0 : i32, i32
  }
  func.func @transform_3(%arg0: i32, %arg1: i32) -> (i32, i32, i32) {
    %c0_i32 = arith.constant 0 : i32
    %c0_i32_0 = arith.constant 0 : i32
    return %arg0, %arg1, %c0_i32 : i32, i32, i32
  }
  func.func @transform_4(%arg0: i32, %arg1: i32) -> (i32, i32, i32) {
    %c0_i32 = arith.constant 0 : i32
    %c0_i32_0 = arith.constant 0 : i32
    %c0_i32_1 = arith.constant 0 : i32
    return %arg0, %c0_i32, %c0_i32_0 : i32, i32, i32
  }
  func.func @transform_5(%arg0: i32, %arg1: i32) -> (i32, i32, i32) {
    %c0_i32 = arith.constant 0 : i32
    %c0_i32_0 = arith.constant 0 : i32
    %c0_i32_1 = arith.constant 0 : i32
    return %arg0, %c0_i32, %c0_i32_0 : i32, i32, i32
  }
}

</mosaic_0001>

<llo_original>
// kernel: tpu_custom_call.1
$region0: #{tpu_custom_call.1}
  #allocation0 [shape = 'u32[]', space=smem, size = 0x4, offset = 0x4, fixed_abs, tag = 'smem constant byte address 0x4 - core index']
  #allocation1 [shape = 'u32[144,128]{1,0:T(1,128)}', space=vmem, size = 0x12000, scoped, tag = 'internal scratch']
  %s0 = inlined_call_operand.hbm [shape: f32[2,384,128], index: 0, kind: input, shape index: {}]
  %s1 = inlined_call_operand.hbm [shape: f32[128,128], index: 1, kind: input, shape index: {}]
  %s2 = inlined_call_operand.vmem [shape: f32[1,128], index: 2, kind: input, shape index: {}]
  %s3 = inlined_call_operand.hbm [shape: f32[2,384,128], index: 3, kind: output, shape index: {0}]
  %s4 = inlined_call_operand.hbm [shape: f32[2,1,128], index: 4, kind: output, shape index: {1}]
  %s5 = inlined_call_operand.hbm [shape: f32[2,1,128], index: 5, kind: output, shape index: {2}]
  %6 = xla_tuple %s3, %s4, %s5
  %s7 = sld [smem:[#allocation0]]
  $region73: #{tpu_custom_call.1} parent=0
    _
  %s9 = ssub.s32 1, %s7
  %s10 = scalar_select 0, %s9, %s7
  $region1: #{tpu_custom_call.1} parent=0
    #allocation2 [shape = 'u8[131072]{0}', space=vmem, size = 0x20000, scoped, tag = 'input window, operand 0']
    #allocation3 [shape = 's32[2]{0}', space=sflag, size = 0x8, scoped, tag = 'scoped memory for tpu_custom_call.1']
    #allocation4 [shape = 's32[2]{0}', space=sflag, size = 0x8, scoped, tag = 'scoped memory for tpu_custom_call.1']
    #allocation5 [shape = 'u8[65536]{0}', space=vmem, size = 0x10000, scoped, tag = 'input window, operand 1, single buffered']
    #allocation6 [shape = 's32[1]{0}', space=sflag, size = 0x4, scoped, tag = 'scoped memory for tpu_custom_call.1']
    #allocation7 [shape = 'u8[131072]{0}', space=vmem, size = 0x20000, scoped, tag = 'output window, operand 0']
    #allocation8 [shape = 'u8[1024]{0}', space=vmem, size = 0x400, scoped, tag = 'output window, operand 1']
    #allocation9 [shape = 's32[2]{0}', space=sflag, size = 0x8, scoped, tag = 'scoped memory for tpu_custom_call.1']
    #allocation10 [shape = 'u8[1024]{0}', space=vmem, size = 0x400, scoped, tag = 'output window, operand 2']
    %11 = vsyncpa [#allocation3], 0
    %s12 = scalar_lea.sflag [#allocation3], 1
    %13 = vsyncpa %s12, 0
    %14 = vsyncpa [#allocation6], 0
    %15 = vsyncpa [#allocation4], 0
    %s16 = scalar_lea.sflag [#allocation4], 1
    %17 = vsyncpa %s16, 0
    %18 = vsyncpa [#allocation9], 0
    %s19 = scalar_lea.sflag [#allocation9], 1
    %20 = vsyncpa %s19, 0
    loop: start=0, step=1, limit=8
    $region2: #{tpu_custom_call.1} parent=1 // loop_pre_header
      _
    $region3: #{tpu_custom_call.1} parent=1 // loop_header
      %s22 = sphi 0, %s26
      %p23 = scmp.ge.s32.totalorder %s22, 8
      %s29 = sphi 0, %s41
      %s30 = sphi 0, %s37
      %s31 = sphi 0, %s29
      %s32 = sphi 0, %s30
      %s33 = sphi 0, %s31
      %s34 = sphi 0, %s32
      %s46 = sphi 0, %s48
      %s49 = sphi 0, %s46
      %s50 = sphi 0, %s49
      %s66 = sphi 0, %s50
      %s70 = sphi 0, %s70
      %s72 = sphi 0, %s70
      %s73 = sphi 0, %s72
      %s87 = sphi 0, %s73
      %s91 = sphi 0, %s91
      %s93 = sphi 0, %s91
      %s94 = sphi 0, %s93
      %s108 = sphi 0, %s94
      %s116 = sphi 0, %s118
      %s119 = sphi 0, %s116
      %s120 = sphi 0, %s119
      %s136 = sphi 0, %s120
      %s142 = sphi 0, %s144
      %s145 = sphi 0, %s142
      %s146 = sphi 0, %s145
      %s162 = sphi 0, %s146
      %s168 = sphi 0, %s170
      %s171 = sphi 0, %s168
      %s172 = sphi 0, %s171
      %s188 = sphi 0, %s172
    $region4: #{tpu_custom_call.1} parent=1 // loop_header_branch
      %25 = sbr.rel (%p23) target = $region8
    $region5: #{tpu_custom_call.1} parent=1 // loop_body
      %s27 = ssub.s32 %s22, 1
      %s28 = ssub.s32 %s22, 2
      %s35 = sadd.s32 1, %s30
      %p36 = scmp.ge.s32.totalorder %s35, 3
      %s37 = scalar_select %p36, 0, %s35
      %s38 = sadd.s32 1, %s29
      %s39 = scalar_select %p36, %s38, %s29
      %p40 = scmp.ge.s32.totalorder %s39, 2
      %s41 = scalar_select %p40, 0, %s39
      %s42 = ssub.s32 %s29, %s41
      %s43 = ssub.s32 %s30, %s37
      %s44 = sor.u32 %s42, %s43
      %p45 = scmp.eq.s32.totalorder %s44, 0
      %s47 = sadd.s32 %s46, 1
      %s48 = scalar_select %p45, %s46, %s47
      %p51 = pneg %p45
      %p52 = scmp.eq.s32.totalorder %s22, 5
      %p53 = por %p51, %p52
      %p54 = scmp.ne.s32.totalorder %s46, %s49
      %p55 = scmp.eq.s32.totalorder %s22, 0
      %p56 = por %p54, %p55
      %p57 = scmp.ne.s32.totalorder %s46, %s49
      %p58 = scmp.eq.s32.totalorder %s27, 5
      %p59 = por %p57, %p58
      %p60 = scmp.ne.s32.totalorder %s49, %s50
      %p61 = scmp.eq.s32.totalorder %s27, 0
      %p62 = por %p60, %p61
      %p63 = scmp.ne.s32.totalorder %s49, %s50
      %p64 = scmp.eq.s32.totalorder %s28, 5
      %p65 = por %p63, %p64
      %p67 = scmp.ne.s32.totalorder %s50, %s66
      %p68 = scmp.eq.s32.totalorder %s28, 0
      %p69 = por %p67, %p68
      %s71 = sadd.s32 %s70, 1
      %p74 = scmp.eq.s32.totalorder %s22, 5
      %p75 = scmp.ne.s32.totalorder %s70, %s72
      %p76 = scmp.eq.s32.totalorder %s22, 0
      %p77 = por %p75, %p76
      %p78 = scmp.ne.s32.totalorder %s70, %s72
      %p79 = scmp.eq.s32.totalorder %s27, 5
      %p80 = por %p78, %p79
      %p81 = scmp.ne.s32.totalorder %s72, %s73
      %p82 = scmp.eq.s32.totalorder %s27, 0
      %p83 = por %p81, %p82
      %p84 = scmp.ne.s32.totalorder %s72, %s73
      %p85 = scmp.eq.s32.totalorder %s28, 5
      %p86 = por %p84, %p85
      %p88 = scmp.ne.s32.totalorder %s73, %s87
      %p89 = scmp.eq.s32.totalorder %s28, 0
      %p90 = por %p88, %p89
      %s92 = sadd.s32 %s91, 1
      %p95 = scmp.eq.s32.totalorder %s22, 5
      %p96 = scmp.ne.s32.totalorder %s91, %s93
      %p97 = scmp.eq.s32.totalorder %s22, 0
      %p98 = por %p96, %p97
      %p99 = scmp.ne.s32.totalorder %s91, %s93
      %p100 = scmp.eq.s32.totalorder %s27, 5
      %p101 = por %p99, %p100
      %p102 = scmp.ne.s32.totalorder %s93, %s94
      %p103 = scmp.eq.s32.totalorder %s27, 0
      %p104 = por %p102, %p103
      %p105 = scmp.ne.s32.totalorder %s93, %s94
      %p106 = scmp.eq.s32.totalorder %s28, 5
      %p107 = por %p105, %p106
      %p109 = scmp.ne.s32.totalorder %s94, %s108
      %p110 = scmp.eq.s32.totalorder %s28, 0
      %p111 = por %p109, %p110
      %s112 = ssub.s32 %s29, %s41
      %s113 = ssub.s32 %s30, %s37
      %s114 = sor.u32 %s112, %s113
      %p115 = scmp.eq.s32.totalorder %s114, 0
      %s117 = sadd.s32 %s116, 1
      %s118 = scalar_select %p115, %s116, %s117
      %p121 = pneg %p115
      %p122 = scmp.eq.s32.totalorder %s22, 5
      %p123 = por %p121, %p122
      %p124 = scmp.ne.s32.totalorder %s116, %s119
      %p125 = scmp.eq.s32.totalorder %s22, 0
      %p126 = por %p124, %p125
      %p127 = scmp.ne.s32.totalorder %s116, %s119
      %p128 = scmp.eq.s32.totalorder %s27, 5
      %p129 = por %p127, %p128
      %p130 = scmp.ne.s32.totalorder %s119, %s120
      %p131 = scmp.eq.s32.totalorder %s27, 0
      %p132 = por %p130, %p131
      %p133 = scmp.ne.s32.totalorder %s119, %s120
      %p134 = scmp.eq.s32.totalorder %s28, 5
      %p135 = por %p133, %p134
      %p137 = scmp.ne.s32.totalorder %s120, %s136
      %p138 = scmp.eq.s32.totalorder %s28, 0
      %p139 = por %p137, %p138
      %s140 = ssub.s32 %s29, %s41
      %p141 = scmp.eq.s32.totalorder %s140, 0
      %s143 = sadd.s32 %s142, 1
      %s144 = scalar_select %p141, %s142, %s143
      %p147 = pneg %p141
      %p148 = scmp.eq.s32.totalorder %s22, 5
      %p149 = por %p147, %p148
      %p150 = scmp.ne.s32.totalorder %s142, %s145
      %p151 = scmp.eq.s32.totalorder %s22, 0
      %p152 = por %p150, %p151
      %p153 = scmp.ne.s32.totalorder %s142, %s145
      %p154 = scmp.eq.s32.totalorder %s27, 5
      %p155 = por %p153, %p154
      %p156 = scmp.ne.s32.totalorder %s145, %s146
      %p157 = scmp.eq.s32.totalorder %s27, 0
      %p158 = por %p156, %p157
      %p159 = scmp.ne.s32.totalorder %s145, %s146
      %p160 = scmp.eq.s32.totalorder %s28, 5
      %p161 = por %p159, %p160
      %p163 = scmp.ne.s32.totalorder %s146, %s162
      %p164 = scmp.eq.s32.totalorder %s28, 0
      %p165 = por %p163, %p164
      %s166 = ssub.s32 %s29, %s41
      %p167 = scmp.eq.s32.totalorder %s166, 0
      %s169 = sadd.s32 %s168, 1
      %s170 = scalar_select %p167, %s168, %s169
      %p173 = pneg %p167
      %p174 = scmp.eq.s32.totalorder %s22, 5
      %p175 = por %p173, %p174
      %p176 = scmp.ne.s32.totalorder %s168, %s171
      %p177 = scmp.eq.s32.totalorder %s22, 0
      %p178 = por %p176, %p177
      %p179 = scmp.ne.s32.totalorder %s168, %s171
      %p180 = scmp.eq.s32.totalorder %s27, 5
      %p181 = por %p179, %p180
      %p182 = scmp.ne.s32.totalorder %s171, %s172
      %p183 = scmp.eq.s32.totalorder %s27, 0
      %p184 = por %p182, %p183
      %p185 = scmp.ne.s32.totalorder %s171, %s172
      %p186 = scmp.eq.s32.totalorder %s28, 5
      %p187 = por %p185, %p186
      %p189 = scmp.ne.s32.totalorder %s172, %s188
      %p190 = scmp.eq.s32.totalorder %s28, 0
      %p191 = por %p189, %p190
      %p192 = scmp.le.s32.totalorder 1, %s22
      %p193 = scmp.lt.s32.totalorder %s22, 7
      %p194 = pnand %p192, %p193
      %p195 = pneg %p194
      // Predicated region
      $region9: #{tpu_custom_call.1} parent=5 // pred_check
        _
      $region10: #{tpu_custom_call.1} parent=5 // pred_check_branch
        %197 = sbr.rel (%p194) target = $region12
      $region11: #{tpu_custom_call.1} parent=5 // pred_region
        %s198 = ssub.s32 %s22, 1
        // Predicated region
        $region13: #{tpu_custom_call.1} parent=11 // pred_check
          %p199 = pneg %p83
        $region14: #{tpu_custom_call.1} parent=11 // pred_check_branch
          %201 = sbr.rel (%p199) target = $region16
        $region15: #{tpu_custom_call.1} parent=11 // pred_region
          %s203 = ssub.s32 2048, 2048
          %204 = vsyncadd [#allocation6], %s203
          %s205 = sshll.u32 [#allocation5], 4
          %s206 = int_to_ptr.vmem [resolvable:$true] %s205
          %211 = dma.hbm_to_vmem [thread:$0]  %s1, 2048, %s206, [#allocation6], 128, 128, 8
        $region16: #{tpu_custom_call.1} parent=11 // pred_fallthru
          _
        // Predicated region
        $region17: #{tpu_custom_call.1} parent=11 // pred_check
          %p212 = pneg %p104
        $region18: #{tpu_custom_call.1} parent=11 // pred_check_branch
          %214 = sbr.rel (%p212) target = $region20
        $region19: #{tpu_custom_call.1} parent=11 // pred_region
          _
        $region20: #{tpu_custom_call.1} parent=11 // pred_fallthru
          _
      $region12: #{tpu_custom_call.1} parent=5 // pred_fallthru
        _
      %p215 = scmp.lt.s32.totalorder %s22, 6
      // Predicated region
      $region21: #{tpu_custom_call.1} parent=5 // pred_check
        %p216 = pneg %p215
      $region22: #{tpu_custom_call.1} parent=5 // pred_check_branch
        %218 = sbr.rel (%p216) target = $region24
      $region23: #{tpu_custom_call.1} parent=5 // pred_region
        // Predicated region
        $region25: #{tpu_custom_call.1} parent=23 // pred_check
          %p219 = pneg %p56
        $region26: #{tpu_custom_call.1} parent=23 // pred_check_branch
          %221 = sbr.rel (%p219) target = $region28
        $region27: #{tpu_custom_call.1} parent=23 // pred_region
          %s222 = sand.u32 %s46, 1
          %s223 = scalar_lea.sflag [#allocation3], %s222
          %s224 = sand.u32 %s46, 1
          %s225 = smul.addr %s224, 128
          %s226 = scalar_lea.vmem [#allocation2], %s225
          %s227 = smul.u32 16, %s30
          %s229 = ssub.s32 2048, 2048
          %230 = vsyncadd %s223, %s229
          %s231 = smul.addr %s29, 48
          %s232 = sadd.s32 %s227, %s231
          %s233 = smul.addr %s232, 128
          %s234 = scalar_lea.hbm %s0, %s233
          %s235 = sshll.u32 %s226, 4
          %s236 = int_to_ptr.vmem [resolvable:$true] %s235
          %241 = dma.hbm_to_vmem [thread:$0]  %s234, 2048, %s236, %s223, 128, 128, 8
        $region28: #{tpu_custom_call.1} parent=23 // pred_fallthru
          _
      $region24: #{tpu_custom_call.1} parent=5 // pred_fallthru
        _
      %p242 = scmp.le.s32.totalorder 1, %s22
      %p243 = scmp.lt.s32.totalorder %s22, 7
      %p244 = pnand %p242, %p243
      %p245 = pneg %p244
      // Predicated region
      $region29: #{tpu_custom_call.1} parent=5 // pred_check
        _
      $region30: #{tpu_custom_call.1} parent=5 // pred_check_branch
        %247 = sbr.rel (%p244) target = $region32
      $region31: #{tpu_custom_call.1} parent=5 // pred_region
        %s248 = ssub.s32 %s22, 1
        %s249 = sand.u32 %s49, 1
        %s250 = scalar_lea.sflag [#allocation3], %s249
        %s251 = sand.u32 %s49, 1
        %s252 = smul.addr %s251, 128
        %s253 = scalar_lea.vmem [#allocation2], %s252
        // Predicated region
        $region33: #{tpu_custom_call.1} parent=31 // pred_check
          %p254 = pneg %p62
        $region34: #{tpu_custom_call.1} parent=31 // pred_check_branch
          %256 = sbr.rel (%p254) target = $region36
        $region35: #{tpu_custom_call.1} parent=31 // pred_region
          %257 = dma.done %s250, 2048
        $region36: #{tpu_custom_call.1} parent=31 // pred_fallthru
          _
        // Predicated region
        $region37: #{tpu_custom_call.1} parent=31 // pred_check
          %p258 = pneg %p83
        $region38: #{tpu_custom_call.1} parent=31 // pred_check_branch
          %260 = sbr.rel (%p258) target = $region40
        $region39: #{tpu_custom_call.1} parent=31 // pred_region
          %261 = dma.done [#allocation6], 2048
        $region40: #{tpu_custom_call.1} parent=31 // pred_fallthru
          _
        %s262 = sand.u32 %s49, 1
        %s263 = scalar_lea.sflag [#allocation3], %s262
        %s264 = sand.u32 %s49, 1
        %s265 = smul.addr %s264, 128
        %s266 = scalar_lea.vmem [#allocation2], %s265
        %p267 = pneg %p62
        %p268 = pneg %p59
        %p269 = pneg %p83
        %p270 = pneg %p80
        %p271 = pneg %p104
        %p272 = pneg %p101
        %p273 = pneg %p132
        %p274 = pneg %p129
        %s275 = sand.u32 %s119, 1
        %s276 = scalar_lea.sflag [#allocation4], %s275
        %s277 = sand.u32 %s119, 1
        %s278 = smul.addr %s277, 128
        %s279 = scalar_lea.vmem [#allocation7], %s278
        %p280 = pneg %p158
        %p281 = pneg %p155
        %s282 = sand.u32 %s27, 1
        %s283 = scalar_lea.sflag [#allocation9], %s282
        %s284 = sand.u32 %s145, 1
        %s285 = scalar_lea.vmem [#allocation8], %s284
        %p286 = pneg %p184
        %p287 = pneg %p181
        %s288 = sand.u32 %s27, 1
        %s289 = scalar_lea.sflag [#allocation9], %s288
        %s290 = sand.u32 %s171, 1
        %s291 = scalar_lea.vmem [#allocation10], %s290
        %s292 = smul.u32 16, %s32
        %s293 = smul.u32 16, %s32
        %p294 = scmp.eq.s32.totalorder %s32, 0
        // Predicated region
        $region41: #{tpu_custom_call.1} parent=31 // pred_check
          %p295 = pneg %p294
        $region42: #{tpu_custom_call.1} parent=31 // pred_check_branch
          %297 = sbr.rel (%p295) target = $region44
        $region43: #{tpu_custom_call.1} parent=31 // pred_region
          %298 = vst [vmem:[%s285] sm:$0x1] 0.0
          %299 = vst [vmem:[%s291] sm:$0x1] 0.0
        $region44: #{tpu_custom_call.1} parent=31 // pred_fallthru
          _
        %v300 = vld [vmem:[%s253] sm:$0xff]
        %v301 = vld [vmem:[%s253 + $0x8] sm:$0xff]
        %v302 = vld [vmem:[%s253 + $0x10] sm:$0xff]
        %v303 = vld [vmem:[%s253 + $0x18] sm:$0xff]
        %v304 = vld [vmem:[%s253 + $0x20] sm:$0xff]
        %v305 = vld [vmem:[%s253 + $0x28] sm:$0xff]
        %v306 = vld [vmem:[%s253 + $0x30] sm:$0xff]
        %v307 = vld [vmem:[%s253 + $0x38] sm:$0xff]
        %v308 = vld [vmem:[%s253 + $0x40] sm:$0xff]
        %v309 = vld [vmem:[%s253 + $0x48] sm:$0xff]
        %v310 = vld [vmem:[%s253 + $0x50] sm:$0xff]
        %v311 = vld [vmem:[%s253 + $0x58] sm:$0xff]
        %v312 = vld [vmem:[%s253 + $0x60] sm:$0xff]
        %v313 = vld [vmem:[%s253 + $0x68] sm:$0xff]
        %v314 = vld [vmem:[%s253 + $0x70] sm:$0xff]
        %v315 = vld [vmem:[%s253 + $0x78] sm:$0xff]
        %v316 = vld [vmem:[#allocation5] sm:$0xff]
        %v317 = vld [vmem:[#allocation5 + $0x8] sm:$0xff]
        %v318 = vld [vmem:[#allocation5 + $0x10] sm:$0xff]
        %v319 = vld [vmem:[#allocation5 + $0x18] sm:$0xff]
        %v320 = vld [vmem:[#allocation5 + $0x20] sm:$0xff]
        %v321 = vld [vmem:[#allocation5 + $0x28] sm:$0xff]
        %v322 = vld [vmem:[#allocation5 + $0x30] sm:$0xff]
        %v323 = vld [vmem:[#allocation5 + $0x38] sm:$0xff]
        %v324 = vld [vmem:[#allocation5 + $0x40] sm:$0xff]
        %v325 = vld [vmem:[#allocation5 + $0x48] sm:$0xff]
        %v326 = vld [vmem:[#allocation5 + $0x50] sm:$0xff]
        %v327 = vld [vmem:[#allocation5 + $0x58] sm:$0xff]
        %v328 = vld [vmem:[#allocation5 + $0x60] sm:$0xff]
        %v329 = vld [vmem:[#allocation5 + $0x68] sm:$0xff]
        %v330 = vld [vmem:[#allocation5 + $0x70] sm:$0xff]
        %v331 = vld [vmem:[#allocation5 + $0x78] sm:$0xff]
        %v332 = vld [vmem:[%s2] sm:$0x1]
        %v334 = vlaneseq
        %v335 = vshrl.u32 %v334, 7
        %v336 = vsub.s32 0, %v335
        %v337 = vrot.slane %v332, %v336
        %339 = vmatprep.subr.mxu0 0.0
        %340 = vmatpush1.msra.mxu0 %v316
        %341 = vmatprep.subr.mxu0 0.0
        %342 = vmatpush1.msra.mxu0 %v317
        %343 = vmatprep.subr.mxu0 0.0
        %344 = vmatpush1.msra.mxu0 %v318
        %345 = vmatprep.subr.mxu0 0.0
        %346 = vmatpush1.msra.mxu0 %v319
        %347 = vmatprep.subr.mxu0 0.0
        %348 = vmatpush1.msra.mxu0 %v320
        %349 = vmatprep.subr.mxu0 0.0
        %350 = vmatpush1.msra.mxu0 %v321
        %351 = vmatprep.subr.mxu0 0.0
        %352 = vmatpush1.msra.mxu0 %v322
        %353 = vmatprep.subr.mxu0 0.0
        %354 = vmatpush1.msra.mxu0 %v323
        %355 = vmatprep.subr.mxu0 0.0
        %356 = vmatpush1.msra.mxu0 %v324
        %357 = vmatprep.subr.mxu0 0.0
        %358 = vmatpush1.msra.mxu0 %v325
        %359 = vmatprep.subr.mxu0 0.0
        %360 = vmatpush1.msra.mxu0 %v326
        %361 = vmatprep.subr.mxu0 0.0
        %362 = vmatpush1.msra.mxu0 %v327
        %363 = vmatprep.subr.mxu0 0.0
        %364 = vmatpush1.msra.mxu0 %v328
        %365 = vmatprep.subr.mxu0 0.0
        %366 = vmatpush1.msra.mxu0 %v329
        %367 = vmatprep.subr.mxu0 0.0
        %368 = vmatpush1.msra.mxu0 %v330
        %369 = vmatprep.subr.mxu0 0.0
        %370 = vmatpush1.msra.mxu0 %v331
        %371 = vmatprep.subr.mxu0 0.0
        %372 = vmatpush1.msra.mxu0 0.0
        %373 = vmatprep.subr.mxu0 0.0
        %374 = vmatpush1.msra.mxu0 0.0
        %375 = vmatprep.subr.mxu0 0.0
        %376 = vmatpush1.msra.mxu0 0.0
        %377 = vmatprep.subr.mxu0 0.0
        %378 = vmatpush1.msra.mxu0 0.0
        %379 = vmatprep.subr.mxu0 0.0
        %380 = vmatpush1.msra.mxu0 0.0
        %381 = vmatprep.subr.mxu0 0.0
        %382 = vmatpush1.msra.mxu0 0.0
        %383 = vmatprep.subr.mxu0 0.0
        %384 = vmatpush1.msra.mxu0 0.0
        %385 = vmatprep.subr.mxu0 0.0
        %386 = vmatpush1.msra.mxu0 0.0
        %387 = vmatprep.subr.mxu0 0.0
        %388 = vmatpush1.msra.mxu0 0.0
        %389 = vmatprep.subr.mxu0 0.0
        %390 = vmatpush1.msra.mxu0 0.0
        %391 = vmatprep.subr.mxu0 0.0
        %392 = vmatpush1.msra.mxu0 0.0
        %393 = vmatprep.subr.mxu0 0.0
        %394 = vmatpush1.msra.mxu0 0.0
        %395 = vmatprep.subr.mxu0 0.0
        %396 = vmatpush1.msra.mxu0 0.0
        %397 = vmatprep.subr.mxu0 0.0
        %398 = vmatpush1.msra.mxu0 0.0
        %399 = vmatprep.subr.mxu0 0.0
        %400 = vmatpush1.msra.mxu0 0.0
        %401 = vmatprep.subr.mxu0 0.0
        %402 = vmatpush1.msra.mxu0 0.0
        %403 = vmatprep.mubr.f32.mxu0 0.0
        %404 = vmatmul.mubr.f32.gmra.mrb[0].mxu0 %v300
        %v405 = vpop.f32.mrb[0].mxu0
        %v406 = vadd.f32 %v337, %v405
        %v407 = vpop.f32.mrb[0].mxu0
        %408 = vmatprep.mubr.f32.mxu0 0.0
        %409 = vmatmul.mubr.f32.gmra.mrb[0].mxu0 %v301
        %v410 = vpop.f32.mrb[0].mxu0
        %v411 = vadd.f32 %v337, %v410
        %v412 = vpop.f32.mrb[0].mxu0
        %413 = vmatprep.mubr.f32.mxu0 0.0
        %414 = vmatmul.mubr.f32.gmra.mrb[0].mxu0 %v302
        %v415 = vpop.f32.mrb[0].mxu0
        %v416 = vadd.f32 %v337, %v415
        %v417 = vpop.f32.mrb[0].mxu0
        %418 = vmatprep.mubr.f32.mxu0 0.0
        %419 = vmatmul.mubr.f32.gmra.mrb[0].mxu0 %v303
        %v420 = vpop.f32.mrb[0].mxu0
        %v421 = vadd.f32 %v337, %v420
        %v422 = vpop.f32.mrb[0].mxu0
        %423 = vmatprep.mubr.f32.mxu0 0.0
        %424 = vmatmul.mubr.f32.gmra.mrb[0].mxu0 %v304
        %v425 = vpop.f32.mrb[0].mxu0
        %v426 = vadd.f32 %v337, %v425
        %v427 = vpop.f32.mrb[0].mxu0
        %428 = vmatprep.mubr.f32.mxu0 0.0
        %429 = vmatmul.mubr.f32.gmra.mrb[0].mxu0 %v305
        %v430 = vpop.f32.mrb[0].mxu0
        %v431 = vadd.f32 %v337, %v430
        %v432 = vpop.f32.mrb[0].mxu0
        %433 = vmatprep.mubr.f32.mxu0 0.0
        %434 = vmatmul.mubr.f32.gmra.mrb[0].mxu0 %v306
        %v435 = vpop.f32.mrb[0].mxu0
        %v436 = vadd.f32 %v337, %v435
        %v437 = vpop.f32.mrb[0].mxu0
        %438 = vmatprep.mubr.f32.mxu0 0.0
        %439 = vmatmul.mubr.f32.gmra.mrb[0].mxu0 %v307
        %v440 = vpop.f32.mrb[0].mxu0
        %v441 = vadd.f32 %v337, %v440
        %v442 = vpop.f32.mrb[0].mxu0
        %443 = vmatprep.mubr.f32.mxu0 0.0
        %444 = vmatmul.mubr.f32.gmra.mrb[0].mxu0 %v308
        %v445 = vpop.f32.mrb[0].mxu0
        %v446 = vadd.f32 %v337, %v445
        %v447 = vpop.f32.mrb[0].mxu0
        %448 = vmatprep.mubr.f32.mxu0 0.0
        %449 = vmatmul.mubr.f32.gmra.mrb[0].mxu0 %v309
        %v450 = vpop.f32.mrb[0].mxu0
        %v451 = vadd.f32 %v337, %v450
        %v452 = vpop.f32.mrb[0].mxu0
        %453 = vmatprep.mubr.f32.mxu0 0.0
        %454 = vmatmul.mubr.f32.gmra.mrb[0].mxu0 %v310
        %v455 = vpop.f32.mrb[0].mxu0
        %v456 = vadd.f32 %v337, %v455
        %v457 = vpop.f32.mrb[0].mxu0
        %458 = vmatprep.mubr.f32.mxu0 0.0
        %459 = vmatmul.mubr.f32.gmra.mrb[0].mxu0 %v311
        %v460 = vpop.f32.mrb[0].mxu0
        %v461 = vadd.f32 %v337, %v460
        %v462 = vpop.f32.mrb[0].mxu0
        %463 = vmatprep.mubr.f32.mxu0 0.0
        %464 = vmatmul.mubr.f32.gmra.mrb[0].mxu0 %v312
        %v465 = vpop.f32.mrb[0].mxu0
        %v466 = vadd.f32 %v337, %v465
        %v467 = vpop.f32.mrb[0].mxu0
        %468 = vmatprep.mubr.f32.mxu0 0.0
        %469 = vmatmul.mubr.f32.gmra.mrb[0].mxu0 %v313
        %v470 = vpop.f32.mrb[0].mxu0
        %v471 = vadd.f32 %v337, %v470
        %v472 = vpop.f32.mrb[0].mxu0
        %473 = vmatprep.mubr.f32.mxu0 0.0
        %474 = vmatmul.mubr.f32.gmra.mrb[0].mxu0 %v314
        %v475 = vpop.f32.mrb[0].mxu0
        %v476 = vadd.f32 %v337, %v475
        %v477 = vpop.f32.mrb[0].mxu0
        %478 = vmatprep.mubr.f32.mxu0 0.0
        %479 = vmatmul.mubr.f32.gmra.mrb[0].mxu0 %v315
        %v480 = vpop.f32.mrb[0].mxu0
        %v481 = vadd.f32 %v337, %v480
        %v482 = vpop.f32.mrb[0].mxu0
        %483 = vdwg.mxu0
        %484 = vst [vmem:[%s279] sm:$0xff] %v406
        %485 = vst [vmem:[%s279 + $0x8] sm:$0xff] %v411
        %486 = vst [vmem:[%s279 + $0x10] sm:$0xff] %v416
        %487 = vst [vmem:[%s279 + $0x18] sm:$0xff] %v421
        %488 = vst [vmem:[%s279 + $0x20] sm:$0xff] %v426
        %489 = vst [vmem:[%s279 + $0x28] sm:$0xff] %v431
        %490 = vst [vmem:[%s279 + $0x30] sm:$0xff] %v436
        %491 = vst [vmem:[%s279 + $0x38] sm:$0xff] %v441
        %492 = vst [vmem:[%s279 + $0x40] sm:$0xff] %v446
        %493 = vst [vmem:[%s279 + $0x48] sm:$0xff] %v451
        %494 = vst [vmem:[%s279 + $0x50] sm:$0xff] %v456
        %495 = vst [vmem:[%s279 + $0x58] sm:$0xff] %v461
        %496 = vst [vmem:[%s279 + $0x60] sm:$0xff] %v466
        %497 = vst [vmem:[%s279 + $0x68] sm:$0xff] %v471
        %498 = vst [vmem:[%s279 + $0x70] sm:$0xff] %v476
        %499 = vst [vmem:[%s279 + $0x78] sm:$0xff] %v481
        %v500 = vlaneseq
        %v501 = vshrl.u32 %v500, 7
        %v502 = vadd.s32 %v501, 8
        %v503 = vadd.s32 %v501, 16
        %v504 = vadd.s32 %v501, 24
        %v505 = vadd.s32 %v501, 32
        %v506 = vadd.s32 %v501, 40
        %v507 = vadd.s32 %v501, 48
        %v508 = vadd.s32 %v501, 56
        %v509 = vadd.s32 %v501, 64
        %v510 = vadd.s32 %v501, 72
        %v511 = vadd.s32 %v501, 80
        %v512 = vadd.s32 %v501, 88
        %v513 = vadd.s32 %v501, 96
        %v514 = vadd.s32 %v501, 104
        %v515 = vadd.s32 %v501, 112
        %v516 = vadd.s32 %v501, 120
        %s517 = smul.u32 %s32, 128
        %v518 = vstv %s517
        %v519 = vadd.s32 %v501, %v518
        %v520 = vadd.s32 %v502, %v518
        %v521 = vadd.s32 %v503, %v518
        %v522 = vadd.s32 %v504, %v518
        %v523 = vadd.s32 %v505, %v518
        %v524 = vadd.s32 %v506, %v518
        %v525 = vadd.s32 %v507, %v518
        %v526 = vadd.s32 %v508, %v518
        %v527 = vadd.s32 %v509, %v518
        %v528 = vadd.s32 %v510, %v518
        %v529 = vadd.s32 %v511, %v518
        %v530 = vadd.s32 %v512, %v518
        %v531 = vadd.s32 %v513, %v518
        %v532 = vadd.s32 %v514, %v518
        %v533 = vadd.s32 %v515, %v518
        %v534 = vadd.s32 %v516, %v518
        %vm535 = vcmp.lt.s32.totalorder %v519, 324
        %vm536 = vcmp.lt.s32.totalorder %v520, 324
        %vm537 = vcmp.lt.s32.totalorder %v521, 324
        %vm538 = vcmp.lt.s32.totalorder %v522, 324
        %vm539 = vcmp.lt.s32.totalorder %v523, 324
        %vm540 = vcmp.lt.s32.totalorder %v524, 324
        %vm541 = vcmp.lt.s32.totalorder %v525, 324
        %vm542 = vcmp.lt.s32.totalorder %v526, 324
        %vm543 = vcmp.lt.s32.totalorder %v527, 324
        %vm544 = vcmp.lt.s32.totalorder %v528, 324
        %vm545 = vcmp.lt.s32.totalorder %v529, 324
        %vm546 = vcmp.lt.s32.totalorder %v530, 324
        %vm547 = vcmp.lt.s32.totalorder %v531, 324
        %vm548 = vcmp.lt.s32.totalorder %v532, 324
        %vm549 = vcmp.lt.s32.totalorder %v533, 324
        %vm550 = vcmp.lt.s32.totalorder %v534, 324
        %v551 = vsel %vm535, 1, 0
        %v552 = vsel %vm536, 1, 0
        %v553 = vsel %vm537, 1, 0
        %v554 = vsel %vm538, 1, 0
        %v555 = vsel %vm539, 1, 0
        %v556 = vsel %vm540, 1, 0
        %v557 = vsel %vm541, 1, 0
        %v558 = vsel %vm542, 1, 0
        %v559 = vsel %vm543, 1, 0
        %v560 = vsel %vm544, 1, 0
        %v561 = vsel %vm545, 1, 0
        %v562 = vsel %vm546, 1, 0
        %v563 = vsel %vm547, 1, 0
        %v564 = vsel %vm548, 1, 0
        %v565 = vsel %vm549, 1, 0
        %v566 = vsel %vm550, 1, 0
        %v567 = vcvt.s32.f32 %v551
        %v568 = vcvt.s32.f32 %v552
        %v569 = vcvt.s32.f32 %v553
        %v570 = vcvt.s32.f32 %v554
        %v571 = vcvt.s32.f32 %v555
        %v572 = vcvt.s32.f32 %v556
        %v573 = vcvt.s32.f32 %v557
        %v574 = vcvt.s32.f32 %v558
        %v575 = vcvt.s32.f32 %v559
        %v576 = vcvt.s32.f32 %v560
        %v577 = vcvt.s32.f32 %v561
        %v578 = vcvt.s32.f32 %v562
        %v579 = vcvt.s32.f32 %v563
        %v580 = vcvt.s32.f32 %v564
        %v581 = vcvt.s32.f32 %v565
        %v582 = vcvt.s32.f32 %v566
        %v583 = vmul.f32 %v406, %v567
        %v584 = vmul.f32 %v411, %v568
        %v585 = vmul.f32 %v416, %v569
        %v586 = vmul.f32 %v421, %v570
        %v587 = vmul.f32 %v426, %v571
        %v588 = vmul.f32 %v431, %v572
        %v589 = vmul.f32 %v436, %v573
        %v590 = vmul.f32 %v441, %v574
        %v591 = vmul.f32 %v446, %v575
        %v592 = vmul.f32 %v451, %v576
        %v593 = vmul.f32 %v456, %v577
        %v594 = vmul.f32 %v461, %v578
        %v595 = vmul.f32 %v466, %v579
        %v596 = vmul.f32 %v471, %v580
        %v597 = vmul.f32 %v476, %v581
        %v598 = vmul.f32 %v481, %v582
        %v599 = vld [vmem:[%s285] sm:$0x1]
        %v600 = vadd.f32 %v583, %v584
        %v601 = vadd.f32 %v600, %v585
        %v602 = vadd.f32 %v601, %v586
        %v603 = vadd.f32 %v602, %v587
        %v604 = vadd.f32 %v603, %v588
        %v605 = vadd.f32 %v604, %v589
        %v606 = vadd.f32 %v605, %v590
        %v607 = vadd.f32 %v606, %v591
        %v608 = vadd.f32 %v607, %v592
        %v609 = vadd.f32 %v608, %v593
        %v610 = vadd.f32 %v609, %v594
        %v611 = vadd.f32 %v610, %v595
        %v612 = vadd.f32 %v611, %v596
        %v613 = vadd.f32 %v612, %v597
        %v614 = vadd.f32 %v613, %v598
        %v615 = vrot.slane %v614, 4
        %v616 = vadd.f32 %v614, %v615
        %v617 = vrot.slane %v616, 2
        %v618 = vadd.f32 %v616, %v617
        %v619 = vrot.slane %v618, 1
        %v620 = vadd.f32 %v618, %v619
        %v621 = vadd.f32 %v599, %v620
        %622 = vst [vmem:[%s285] sm:$0x1] %v621
        %v623 = vld [vmem:[%s291] sm:$0x1]
        %v624 = vmul.f32 %v583, %v406
        %v625 = vmul.f32 %v584, %v411
        %v626 = vmul.f32 %v585, %v416
        %v627 = vmul.f32 %v586, %v421
        %v628 = vmul.f32 %v587, %v426
        %v629 = vmul.f32 %v588, %v431
        %v630 = vmul.f32 %v589, %v436
        %v631 = vmul.f32 %v590, %v441
        %v632 = vmul.f32 %v591, %v446
        %v633 = vmul.f32 %v592, %v451
        %v634 = vmul.f32 %v593, %v456
        %v635 = vmul.f32 %v594, %v461
        %v636 = vmul.f32 %v595, %v466
        %v637 = vmul.f32 %v596, %v471
        %v638 = vmul.f32 %v597, %v476
        %v639 = vmul.f32 %v598, %v481
        %v640 = vadd.f32 %v624, %v625
        %v641 = vadd.f32 %v640, %v626
        %v642 = vadd.f32 %v641, %v627
        %v643 = vadd.f32 %v642, %v628
        %v644 = vadd.f32 %v643, %v629
        %v645 = vadd.f32 %v644, %v630
        %v646 = vadd.f32 %v645, %v631
        %v647 = vadd.f32 %v646, %v632
        %v648 = vadd.f32 %v647, %v633
        %v649 = vadd.f32 %v648, %v634
        %v650 = vadd.f32 %v649, %v635
        %v651 = vadd.f32 %v650, %v636
        %v652 = vadd.f32 %v651, %v637
        %v653 = vadd.f32 %v652, %v638
        %v654 = vadd.f32 %v653, %v639
        %v655 = vrot.slane %v654, 4
        %v656 = vadd.f32 %v654, %v655
        %v657 = vrot.slane %v656, 2
        %v658 = vadd.f32 %v656, %v657
        %v659 = vrot.slane %v658, 1
        %v660 = vadd.f32 %v658, %v659
        %v661 = vadd.f32 %v623, %v660
        %662 = vst [vmem:[%s291] sm:$0x1] %v661
        %s663 = sand.u32 %s119, 1
        %s664 = scalar_lea.sflag [#allocation4], %s663
        %s665 = sand.u32 %s119, 1
        %s666 = smul.addr %s665, 128
        %s667 = scalar_lea.vmem [#allocation7], %s666
        %s668 = sand.u32 %s27, 1
        %s669 = scalar_lea.sflag [#allocation9], %s668
        %s670 = sand.u32 %s145, 1
        %s671 = scalar_lea.vmem [#allocation8], %s670
        %s672 = sand.u32 %s27, 1
        %s673 = scalar_lea.sflag [#allocation9], %s672
        %s674 = sand.u32 %s171, 1
        %s675 = scalar_lea.vmem [#allocation10], %s674
        // Predicated region
        $region45: #{tpu_custom_call.1} parent=31 // pred_check
          %p676 = pneg %p129
        $region46: #{tpu_custom_call.1} parent=31 // pred_check_branch
          %678 = sbr.rel (%p676) target = $region48
        $region47: #{tpu_custom_call.1} parent=31 // pred_region
          %s679 = smul.u32 16, %s32
          %s681 = ssub.s32 2048, 2048
          %682 = vsyncadd %s664, %s681
          %s683 = smul.addr %s31, 48
          %s684 = sadd.s32 %s679, %s683
          %s685 = smul.addr %s684, 128
          %s686 = scalar_lea.hbm %s3, %s685
          %s687 = sshll.u32 %s667, 4
          %s688 = int_to_ptr.vmem [resolvable:$true] %s687
          %693 = dma.vmem_to_hbm [thread:$0]  %s688, 2048, %s686, %s664, 128, 128, 8
        $region48: #{tpu_custom_call.1} parent=31 // pred_fallthru
          _
        // Predicated region
        $region49: #{tpu_custom_call.1} parent=31 // pred_check
          %p694 = pneg %p155
        $region50: #{tpu_custom_call.1} parent=31 // pred_check_branch
          %696 = sbr.rel (%p694) target = $region52
        $region51: #{tpu_custom_call.1} parent=31 // pred_region
          %s698 = ssub.s32 16, 16
          %699 = vsyncadd %s669, %s698
          %s700 = smul.addr %s31, 16
          %s701 = scalar_lea.hbm %s4, %s700
          %s703 = sshll.u32 %s671, 4
          %s704 = int_to_ptr.vmem [resolvable:$true] %s703
          %706 = dma.vmem_to_hbm [thread:$0]  %s704, 16, %s701, %s669
        $region52: #{tpu_custom_call.1} parent=31 // pred_fallthru
          _
        // Predicated region
        $region53: #{tpu_custom_call.1} parent=31 // pred_check
          %p707 = pneg %p181
        $region54: #{tpu_custom_call.1} parent=31 // pred_check_branch
          %709 = sbr.rel (%p707) target = $region56
        $region55: #{tpu_custom_call.1} parent=31 // pred_region
          %s711 = ssub.s32 16, 16
          %712 = vsyncadd %s673, %s711
          %s713 = smul.addr %s31, 16
          %s714 = scalar_lea.hbm %s5, %s713
          %s716 = sshll.u32 %s675, 4
          %s717 = int_to_ptr.vmem [resolvable:$true] %s716
          %719 = dma.vmem_to_hbm [thread:$0]  %s717, 16, %s714, %s673
        $region56: #{tpu_custom_call.1} parent=31 // pred_fallthru
          _
      $region32: #{tpu_custom_call.1} parent=5 // pred_fallthru
        _
      %p720 = scmp.le.s32.totalorder 2, %s22
      // Predicated region
      $region57: #{tpu_custom_call.1} parent=5 // pred_check
        %p721 = pneg %p720
      $region58: #{tpu_custom_call.1} parent=5 // pred_check_branch
        %723 = sbr.rel (%p721) target = $region60
      $region59: #{tpu_custom_call.1} parent=5 // pred_region
        %s724 = ssub.s32 %s22, 2
        // Predicated region
        $region61: #{tpu_custom_call.1} parent=59 // pred_check
          %p725 = pneg %p135
        $region62: #{tpu_custom_call.1} parent=59 // pred_check_branch
          %727 = sbr.rel (%p725) target = $region64
        $region63: #{tpu_custom_call.1} parent=59 // pred_region
          %s728 = sand.u32 %s120, 1
          %s729 = scalar_lea.sflag [#allocation4], %s728
          %s730 = sand.u32 %s120, 1
          %s731 = smul.addr %s730, 128
          %s732 = scalar_lea.vmem [#allocation7], %s731
          %733 = dma.done %s729, 2048
        $region64: #{tpu_custom_call.1} parent=59 // pred_fallthru
          _
        // Predicated region
        $region65: #{tpu_custom_call.1} parent=59 // pred_check
          %p734 = pneg %p161
        $region66: #{tpu_custom_call.1} parent=59 // pred_check_branch
          %736 = sbr.rel (%p734) target = $region68
        $region67: #{tpu_custom_call.1} parent=59 // pred_region
          %s737 = sand.u32 %s28, 1
          %s738 = scalar_lea.sflag [#allocation9], %s737
          %s739 = sand.u32 %s146, 1
          %s740 = scalar_lea.vmem [#allocation8], %s739
          %741 = dma.done %s738, 16
        $region68: #{tpu_custom_call.1} parent=59 // pred_fallthru
          _
        // Predicated region
        $region69: #{tpu_custom_call.1} parent=59 // pred_check
          %p742 = pneg %p187
        $region70: #{tpu_custom_call.1} parent=59 // pred_check_branch
          %744 = sbr.rel (%p742) target = $region72
        $region71: #{tpu_custom_call.1} parent=59 // pred_region
          %s745 = sand.u32 %s28, 1
          %s746 = scalar_lea.sflag [#allocation9], %s745
          %s747 = sand.u32 %s172, 1
          %s748 = scalar_lea.vmem [#allocation10], %s747
          %749 = dma.done %s746, 16
        $region72: #{tpu_custom_call.1} parent=59 // pred_fallthru
          _
      $region60: #{tpu_custom_call.1} parent=5 // pred_fallthru
        _
    $region6: #{tpu_custom_call.1} parent=1 // loop_footer
      %s26 = sadd.s32 1, %s22
    $region7: #{tpu_custom_call.1} parent=1 // loop_footer_branch
      %21 = sbr.rel target = $region3
    $region8: #{tpu_custom_call.1} parent=1 // loop_exit
      _
    %750 = vsyncpa [#allocation3], 1
    %s751 = scalar_lea.sflag [#allocation3], 1
    %752 = vsyncpa %s751, 1
    %753 = vsyncpa [#allocation6], 1
    %754 = vsyncpa [#allocation4], 1
    %s755 = scalar_lea.sflag [#allocation4], 1
    %756 = vsyncpa %s755, 1
    %757 = vsyncpa [#allocation9], 1
    %s758 = scalar_lea.sflag [#allocation9], 1
    %759 = vsyncpa %s758, 1

</llo_original>
